<compile_context>
chip_gen: v7x
topology: tpu7x:2x2x1
jax: 0.10.0
libtpu: 0.0.40
codegen_flags: <defaults>
</compile_context>

<pallas_src>
import functools

import jax
import jax.numpy as jnp
from jax import lax
from jax.experimental import pallas as pl
from jax.experimental.pallas import tpu as pltpu

_LANES = 128
_VMEM_LIMIT = 32 * 1024 * 1024  # safe on v5e (128 MiB phys) and v7x (64 MiB phys)


def _round_up(n, m):
    return (n + m - 1) // m * m


# ----------------------------------------------------------------------------
# Binary fast path: num_classes == 2, rows laid out lane-dense.
# ----------------------------------------------------------------------------
def _gumbel_binary_kernel(x0_ref, x1_ref, noise_ref, o0_ref, o1_ref):
    # argmax over 2 classes of (x + g)/tau  ==  sign of (x0 - x1) + (g0 - g1),
    # where g0 - g1 ~ Logistic(0,1) is `noise_ref`.  tau > 0 does not change
    # the argmax, so no softmax / division is needed for the hard forward.
    d = (x0_ref[...].astype(jnp.float32)
         - x1_ref[...].astype(jnp.float32)
         + noise_ref[...])
    pick0 = d >= 0.0  # ties -> first class (argmax first-index semantics)
    one = jnp.float32(1.0)
    zero = jnp.float32(0.0)
    o0_ref[...] = jnp.where(pick0, one, zero).astype(o0_ref.dtype)
    o1_ref[...] = jnp.where(pick0, zero, one).astype(o1_ref.dtype)


def _binary_path(x2, key, *, max_block_sub=2048):
    rows = x2.shape[0]
    dtype = x2.dtype
    x0 = x2[:, 0]
    x1 = x2[:, 1]
    noise = jax.random.logistic(key, (rows,), dtype=jnp.float32)

    # Lay the flattened rows out as (sublanes, 128 lanes): fully dense vregs.
    n_sub = pl.cdiv(rows, _LANES)
    block_sub = min(max_block_sub, _round_up(n_sub, 8))  # multiple of 8
    n_sub_p = _round_up(n_sub, block_sub)
    rows_p = n_sub_p * _LANES
    pad = rows_p - rows
    if pad:
        x0 = jnp.pad(x0, (0, pad))
        x1 = jnp.pad(x1, (0, pad))
        noise = jnp.pad(noise, (0, pad))
    x0 = x0.reshape(n_sub_p, _LANES)
    x1 = x1.reshape(n_sub_p, _LANES)
    noise = noise.reshape(n_sub_p, _LANES)

    spec = pl.BlockSpec((block_sub, _LANES), lambda i: (i, 0))
    grid = (n_sub_p // block_sub,)
    itemsize = jnp.dtype(dtype).itemsize
    cost = pl.CostEstimate(
        flops=int(4 * rows_p),
        transcendentals=0,
        bytes_accessed=int(rows_p * (4 * itemsize + 4)),
    )

    o0, o1 = pl.pallas_call(
        _gumbel_binary_kernel,
        out_shape=(jax.ShapeDtypeStruct((n_sub_p, _LANES), dtype),
                   jax.ShapeDtypeStruct((n_sub_p, _LANES), dtype)),
        grid=grid,
        in_specs=[spec, spec, spec],
        out_specs=(spec, spec),
        compiler_params=pltpu.CompilerParams(
            dimension_semantics=("parallel",),
            vmem_limit_bytes=_VMEM_LIMIT),
        cost_estimate=cost,
    )(x0, x1, noise)

    return jnp.stack([o0.reshape(-1)[:rows], o1.reshape(-1)[:rows]], axis=-1)


# ----------------------------------------------------------------------------
# Generic path: any num_classes (class axis kept on lanes).
# ----------------------------------------------------------------------------
def _gumbel_generic_kernel(x_ref, g_ref, o_ref, *, num_classes):
    logits = x_ref[...].astype(jnp.float32) + g_ref[...]
    m = jnp.max(logits, axis=-1, keepdims=True)
    col = lax.broadcasted_iota(jnp.int32, logits.shape, logits.ndim - 1)
    idx = jnp.min(jnp.where(logits >= m, col, num_classes),
                  axis=-1, keepdims=True)  # first maximal index
    o_ref[...] = jnp.where(col == idx, jnp.float32(1.0),
                           jnp.float32(0.0)).astype(o_ref.dtype)


def _generic_path(x2, key, *, target_block_bytes=2 << 20):
    rows, num_classes = x2.shape
    dtype = x2.dtype
    g = jax.random.gumbel(key, (rows, num_classes), dtype=jnp.float32)

    max_rows = max(8, (target_block_bytes // (num_classes * 4)) // 8 * 8)
    block_rows = min(max_rows, _round_up(rows, 8))
    rows_p = _round_up(rows, block_rows)
    pad = rows_p - rows
    if pad:
        x2 = jnp.pad(x2, ((0, pad), (0, 0)))
        g = jnp.pad(g, ((0, pad), (0, 0)))

    spec = pl.BlockSpec((block_rows, num_classes), lambda i: (i, 0))
    grid = (rows_p // block_rows,)
    itemsize = jnp.dtype(dtype).itemsize
    cost = pl.CostEstimate(
        flops=int(6 * rows_p * num_classes),
        transcendentals=0,
        bytes_accessed=int(rows_p * num_classes * (2 * itemsize + 4)),
    )

    out2 = pl.pallas_call(
        functools.partial(_gumbel_generic_kernel, num_classes=num_classes),
        out_shape=jax.ShapeDtypeStruct((rows_p, num_classes), dtype),
        grid=grid,
        in_specs=[spec, spec],
        out_specs=spec,
        compiler_params=pltpu.CompilerParams(
            dimension_semantics=("parallel",),
            vmem_limit_bytes=_VMEM_LIMIT),
        cost_estimate=cost,
    )(x2, g)
    return out2[:rows]


# ----------------------------------------------------------------------------
# Public API
# ----------------------------------------------------------------------------
def gumbel_softmax_hard(x, tau, key):
    """Forward of F.gumbel_softmax(x, tau=tau, hard=True) over the last axis."""
    if tau <= 0:
        raise ValueError("tau must be positive")
    orig_shape = x.shape
    num_classes = orig_shape[-1]
    x2 = x.reshape(-1, num_classes)
    if num_classes == 2:
        out2 = _binary_path(x2, key)
    else:
        out2 = _generic_path(x2, key)
    return out2.reshape(orig_shape)


class GumbelMaxBinary:
    """Mirror of the PyTorch GumbelMaxBinary module (forward only)."""

    def __init__(self, tau):
        self.tau = tau

    def __call__(self, x, key):
        return gumbel_softmax_hard(x, self.tau, key)


if __name__ == "__main__":
    key = jax.random.PRNGKey(0)
    k1, k2, k3, k4 = jax.random.split(key, 4)

    # Binary case (the GumbelMaxBinary head inside Generator): last axis = 2.
    x = jax.random.normal(k1, (2, 8, 8, 2), dtype=jnp.float32)  # 128 rows x 2
    y = jax.block_until_ready(gumbel_softmax_hard(x, tau=0.1, key=k2))
    assert y.shape == x.shape and y.dtype == x.dtype
    assert bool(jnp.all(jnp.sum(y, axis=-1) == 1.0))
    assert bool(jnp.all((y == 0.0) | (y == 1.0)))

    # Generic path sanity check (num_classes != 2).
    xg = jax.random.normal(k3, (16, 8), dtype=jnp.float32)
    yg = jax.block_until_ready(gumbel_softmax_hard(xg, tau=0.5, key=k4))
    assert yg.shape == xg.shape
    assert bool(jnp.all(jnp.sum(yg, axis=-1) == 1.0))
    assert bool(jnp.all((yg == 0.0) | (yg == 1.0)))

    # Minimal Generator-style binary head: Linear -> Sigmoid -> GumbelMaxBinary(0.1).
    kp = jax.random.split(jax.random.PRNGKey(1), 3)
    z = jax.random.normal(kp[0], (8, 12), dtype=jnp.float32)       # latents
    w = jax.random.normal(kp[1], (12, 2), dtype=jnp.float32) * 0.3  # head weights
    head_in = jax.nn.sigmoid(z @ w)
    head = jax.block_until_ready(GumbelMaxBinary(0.1)(head_in, kp[2]))
    assert head.shape == (8, 2)
    assert bool(jnp.all(jnp.sum(head, axis=-1) == 1.0))

    print("KERNEL_OK")
</pallas_src>

<mosaic_0001>
module attributes {stable_mosaic.version = 11 : i64} {
  func.func @_gumbel_binary_kernel(%arg0: i32, %arg1: memref<8x128xf32, #tpu.memory_space<vmem>>, %arg2: memref<8x128xf32, #tpu.memory_space<vmem>>, %arg3: memref<8x128xf32, #tpu.memory_space<vmem>>, %arg4: memref<8x128xf32, #tpu.memory_space<vmem>>, %arg5: memref<8x128xf32, #tpu.memory_space<vmem>>) attributes {dimension_semantics = [#tpu.dimension_semantics<parallel>], iteration_bounds = array<i64: 1>, scalar_prefetch = 0 : i64, scratch_operands = 0 : i64, tpu.core_type = #tpu.core_type<tc>, window_params = [{transform_indices = @transform_0, window_bounds = array<i64: 8, 128>}, {transform_indices = @transform_1, window_bounds = array<i64: 8, 128>}, {transform_indices = @transform_2, window_bounds = array<i64: 8, 128>}, {transform_indices = @transform_3, window_bounds = array<i64: 8, 128>}, {transform_indices = @transform_4, window_bounds = array<i64: 8, 128>}]} {
    %c0 = arith.constant 0 : index
    %c0_0 = arith.constant 0 : index
    %0 = vector.load %arg1[%c0, %c0_0] : memref<8x128xf32, #tpu.memory_space<vmem>>, vector<8x128xf32>
    %c0_1 = arith.constant 0 : index
    %c0_2 = arith.constant 0 : index
    %1 = vector.load %arg2[%c0_1, %c0_2] : memref<8x128xf32, #tpu.memory_space<vmem>>, vector<8x128xf32>
    %2 = arith.subf %0, %1 : vector<8x128xf32>
    %c0_3 = arith.constant 0 : index
    %c0_4 = arith.constant 0 : index
    %3 = vector.load %arg3[%c0_3, %c0_4] : memref<8x128xf32, #tpu.memory_space<vmem>>, vector<8x128xf32>
    %4 = arith.addf %2, %3 : vector<8x128xf32>
    %cst = arith.constant 0.000000e+00 : f32
    %5 = vector.broadcast %cst : f32 to vector<8x128xf32>
    %6 = arith.cmpf oge, %4, %5 : vector<8x128xf32>
    %cst_5 = arith.constant 1.000000e+00 : f32
    %cst_6 = arith.constant 0.000000e+00 : f32
    %7 = vector.broadcast %cst_5 : f32 to vector<8x128xf32>
    %8 = vector.broadcast %cst_6 : f32 to vector<8x128xf32>
    %9 = arith.select %6, %7, %8 : vector<8x128xi1>, vector<8x128xf32>
    %c0_7 = arith.constant 0 : index
    %c0_8 = arith.constant 0 : index
    %10 = vector.load %arg4[%c0_7, %c0_8] : memref<8x128xf32, #tpu.memory_space<vmem>>, vector<8x128xf32>
    tpu.vector_store %arg4[%c0_7, %c0_8], %9 {strides = array<i32>} : memref<8x128xf32, #tpu.memory_space<vmem>>, vector<8x128xf32>,
    %cst_9 = arith.constant 0.000000e+00 : f32
    %cst_10 = arith.constant 1.000000e+00 : f32
    %11 = vector.broadcast %cst_9 : f32 to vector<8x128xf32>
    %12 = vector.broadcast %cst_10 : f32 to vector<8x128xf32>
    %13 = arith.select %6, %11, %12 : vector<8x128xi1>, vector<8x128xf32>
    %c0_11 = arith.constant 0 : index
    %c0_12 = arith.constant 0 : index
    %14 = vector.load %arg5[%c0_11, %c0_12] : memref<8x128xf32, #tpu.memory_space<vmem>>, vector<8x128xf32>
    tpu.vector_store %arg5[%c0_11, %c0_12], %13 {strides = array<i32>} : memref<8x128xf32, #tpu.memory_space<vmem>>, vector<8x128xf32>,
    return
  }
  func.func @transform_0(%arg0: i32) -> (i32, i32) {
    %c0_i32 = arith.constant 0 : i32
    %c0_i32_0 = arith.constant 0 : i32
    return %arg0, %c0_i32 : i32, i32
  }
  func.func @transform_1(%arg0: i32) -> (i32, i32) {
    %c0_i32 = arith.constant 0 : i32
    %c0_i32_0 = arith.constant 0 : i32
    return %arg0, %c0_i32 : i32, i32
  }
  func.func @transform_2(%arg0: i32) -> (i32, i32) {
    %c0_i32 = arith.constant 0 : i32
    %c0_i32_0 = arith.constant 0 : i32
    return %arg0, %c0_i32 : i32, i32
  }
  func.func @transform_3(%arg0: i32) -> (i32, i32) {
    %c0_i32 = arith.constant 0 : i32
    %c0_i32_0 = arith.constant 0 : i32
    return %arg0, %c0_i32 : i32, i32
  }
  func.func @transform_4(%arg0: i32) -> (i32, i32) {
    %c0_i32 = arith.constant 0 : i32
    %c0_i32_0 = arith.constant 0 : i32
    return %arg0, %c0_i32 : i32, i32
  }
}

</mosaic_0001>

<llo_original>
// kernel: tpu_custom_call.1
$region0: #{tpu_custom_call.1}
  #allocation0 [shape = 'u32[]', space=smem, size = 0x4, offset = 0x4, fixed_abs, tag = 'smem constant byte address 0x4 - core index']
  #allocation1 [shape = 'u32[144,128]{1,0:T(1,128)}', space=vmem, size = 0x12000, scoped, tag = 'internal scratch']
  %s0 = inlined_call_operand.hbm [shape: f32[8,128], index: 0, kind: input, shape index: {}]
  %s1 = inlined_call_operand.hbm [shape: f32[8,128], index: 1, kind: input, shape index: {}]
  %s2 = inlined_call_operand.hbm [shape: f32[8,128], index: 2, kind: input, shape index: {}]
  %s3 = inlined_call_operand.hbm [shape: f32[8,128], index: 3, kind: output, shape index: {0}]
  %s4 = inlined_call_operand.hbm [shape: f32[8,128], index: 4, kind: output, shape index: {1}]
  %5 = xla_tuple %s3, %s4
  %s6 = sld [smem:[#allocation0]]
  $region42: #{tpu_custom_call.1} parent=0
    _
  %s8 = ssub.s32 1, %s6
  %s9 = scalar_select 0, %s8, %s6
  $region1: #{tpu_custom_call.1} parent=0
    #allocation2 [shape = 'u8[4096]{0}', space=vmem, size = 0x1000, scoped, tag = 'input window, operand 0, single buffered']
    #allocation3 [shape = 's32[1]{0}', space=sflag, size = 0x4, scoped, tag = 'scoped memory for tpu_custom_call.1']
    #allocation4 [shape = 's32[1]{0}', space=sflag, size = 0x4, scoped, tag = 'scoped memory for tpu_custom_call.1']
    #allocation5 [shape = 'u8[4096]{0}', space=vmem, size = 0x1000, scoped, tag = 'input window, operand 1, single buffered']
    #allocation6 [shape = 's32[1]{0}', space=sflag, size = 0x4, scoped, tag = 'scoped memory for tpu_custom_call.1']
    #allocation7 [shape = 'u8[4096]{0}', space=vmem, size = 0x1000, scoped, tag = 'input window, operand 2, single buffered']
    #allocation8 [shape = 'u8[4096]{0}', space=vmem, size = 0x1000, scoped, tag = 'output window, operand 0, single buffered']
    #allocation9 [shape = 'u8[4096]{0}', space=vmem, size = 0x1000, scoped, tag = 'output window, operand 1, single buffered']
    #allocation10 [shape = 's32[1]{0}', space=sflag, size = 0x4, scoped, tag = 'scoped memory for tpu_custom_call.1']
    %10 = vsyncpa [#allocation3], 0
    %11 = vsyncpa [#allocation6], 0
    %12 = vsyncpa [#allocation4], 0
    %13 = vsyncpa [#allocation10], 0
    // Predicated region
    $region2: #{tpu_custom_call.1} parent=1 // pred_check
      _
    $region3: #{tpu_custom_call.1} parent=1 // pred_check_branch
      %15 = sbr.rel (0) target = $region5
    $region4: #{tpu_custom_call.1} parent=1 // pred_region
      %s17 = ssub.s32 128, 128
      %18 = vsyncadd [#allocation3], %s17
      %s20 = sshll.u32 [#allocation2], 4
      %s21 = int_to_ptr.vmem [resolvable:$true] %s20
      %23 = dma.hbm_to_vmem [thread:$0]  %s0, 128, %s21, [#allocation3]
    $region5: #{tpu_custom_call.1} parent=1 // pred_fallthru
      _
    // Predicated region
    $region6: #{tpu_custom_call.1} parent=1 // pred_check
      _
    $region7: #{tpu_custom_call.1} parent=1 // pred_check_branch
      %25 = sbr.rel (0) target = $region9
    $region8: #{tpu_custom_call.1} parent=1 // pred_region
      %s27 = ssub.s32 128, 128
      %28 = vsyncadd [#allocation6], %s27
      %s30 = sshll.u32 [#allocation5], 4
      %s31 = int_to_ptr.vmem [resolvable:$true] %s30
      %33 = dma.hbm_to_vmem [thread:$0]  %s1, 128, %s31, [#allocation6]
    $region9: #{tpu_custom_call.1} parent=1 // pred_fallthru
      _
    // Predicated region
    $region10: #{tpu_custom_call.1} parent=1 // pred_check
      _
    $region11: #{tpu_custom_call.1} parent=1 // pred_check_branch
      %35 = sbr.rel (0) target = $region13
    $region12: #{tpu_custom_call.1} parent=1 // pred_region
      %s37 = ssub.s32 128, 128
      %38 = vsyncadd [#allocation6], %s37
      %s40 = sshll.u32 [#allocation7], 4
      %s41 = int_to_ptr.vmem [resolvable:$true] %s40
      %43 = dma.hbm_to_vmem [thread:$0]  %s2, 128, %s41, [#allocation6]
    $region13: #{tpu_custom_call.1} parent=1 // pred_fallthru
      _
    // Predicated region
    $region14: #{tpu_custom_call.1} parent=1 // pred_check
      _
    $region15: #{tpu_custom_call.1} parent=1 // pred_check_branch
      %45 = sbr.rel (0) target = $region17
    $region16: #{tpu_custom_call.1} parent=1 // pred_region
      %46 = dma.done [#allocation3], 128
    $region17: #{tpu_custom_call.1} parent=1 // pred_fallthru
      _
    // Predicated region
    $region18: #{tpu_custom_call.1} parent=1 // pred_check
      _
    $region19: #{tpu_custom_call.1} parent=1 // pred_check_branch
      %48 = sbr.rel (0) target = $region21
    $region20: #{tpu_custom_call.1} parent=1 // pred_region
      %49 = dma.done [#allocation6], 128
    $region21: #{tpu_custom_call.1} parent=1 // pred_fallthru
      _
    // Predicated region
    $region22: #{tpu_custom_call.1} parent=1 // pred_check
      _
    $region23: #{tpu_custom_call.1} parent=1 // pred_check_branch
      %51 = sbr.rel (0) target = $region25
    $region24: #{tpu_custom_call.1} parent=1 // pred_region
      %52 = dma.done [#allocation6], 128
    $region25: #{tpu_custom_call.1} parent=1 // pred_fallthru
      _
    %v53 = vld [vmem:[#allocation2] sm:$0xff]
    %v54 = vld [vmem:[#allocation5] sm:$0xff]
    %v55 = vsub.f32 %v53, %v54
    %v56 = vld [vmem:[#allocation7] sm:$0xff]
    %v57 = vadd.f32 %v55, %v56
    %vm58 = vcmp.ge.f32.partialorder %v57, 0.0
    %v59 = vsel %vm58, 1.0, 0.0
    %60 = vst [vmem:[#allocation8] sm:$0xff] %v59
    %v61 = vsel %vm58, 0.0, 1.0
    %62 = vst [vmem:[#allocation9] sm:$0xff] %v61
    // Predicated region
    $region26: #{tpu_custom_call.1} parent=1 // pred_check
      _
    $region27: #{tpu_custom_call.1} parent=1 // pred_check_branch
      %64 = sbr.rel (0) target = $region29
    $region28: #{tpu_custom_call.1} parent=1 // pred_region
      %s66 = ssub.s32 128, 128
      %67 = vsyncadd [#allocation4], %s66
      %s69 = sshll.u32 [#allocation8], 4
      %s70 = int_to_ptr.vmem [resolvable:$true] %s69
      %72 = dma.vmem_to_hbm [thread:$0]  %s70, 128, %s3, [#allocation4]
    $region29: #{tpu_custom_call.1} parent=1 // pred_fallthru
      _
    // Predicated region
    $region30: #{tpu_custom_call.1} parent=1 // pred_check
      _
    $region31: #{tpu_custom_call.1} parent=1 // pred_check_branch
      %74 = sbr.rel (0) target = $region33
    $region32: #{tpu_custom_call.1} parent=1 // pred_region
      %s76 = ssub.s32 128, 128
      %77 = vsyncadd [#allocation10], %s76
      %s79 = sshll.u32 [#allocation9], 4
      %s80 = int_to_ptr.vmem [resolvable:$true] %s79
      %82 = dma.vmem_to_hbm [thread:$0]  %s80, 128, %s4, [#allocation10]
    $region33: #{tpu_custom_call.1} parent=1 // pred_fallthru
      _
    // Predicated region
    $region34: #{tpu_custom_call.1} parent=1 // pred_check
      _
    $region35: #{tpu_custom_call.1} parent=1 // pred_check_branch
      %84 = sbr.rel (0) target = $region37
    $region36: #{tpu_custom_call.1} parent=1 // pred_region
      %85 = dma.done [#allocation4], 128
    $region37: #{tpu_custom_call.1} parent=1 // pred_fallthru
      _
    // Predicated region
    $region38: #{tpu_custom_call.1} parent=1 // pred_check
      _
    $region39: #{tpu_custom_call.1} parent=1 // pred_check_branch
      %87 = sbr.rel (0) target = $region41
    $region40: #{tpu_custom_call.1} parent=1 // pred_region
      %88 = dma.done [#allocation10], 128
    $region41: #{tpu_custom_call.1} parent=1 // pred_fallthru
      _
    %89 = vsyncpa [#allocation3], 1
    %90 = vsyncpa [#allocation6], 1
    %91 = vsyncpa [#allocation4], 1
    %92 = vsyncpa [#allocation10], 1

</llo_original>
